<compile_context>
chip_gen: v7x
topology: tpu7x:2x2x1
jax: 0.10.0
libtpu: 0.0.40
codegen_flags: <defaults>
</compile_context>

<pallas_src>
import jax
import jax.numpy as jnp
from jax.experimental import pallas as pl
from jax.experimental.pallas import tpu as pltpu


def critic_kernel(x_ref, w1_ref, w2_ref, b2_ref, q_ref):
    # x_ref : (TB, Din)  packed [states | actions | 1]        (VMEM, f32, streamed)
    # w1_ref: (Din, Hp)  packed [w1_s ; w1_a ; b1], 0-padded  (VMEM, f32, resident)
    # w2_ref: (1, Hp)    layer-2 weight row, 0-padded         (VMEM, f32, resident)
    # b2_ref: (1, 1)     layer-2 bias                         (SMEM scalar)
    # q_ref : (TB, 1)
    x = x_ref[...].astype(jnp.bfloat16)
    w1 = w1_ref[...].astype(jnp.bfloat16)
    # Layer 1: single MXU pass with f32 accumulation; the ones-column of x times
    # the b1 row of w1 applies the bias. ReLU on the VPU in f32.
    y = jnp.maximum(jnp.dot(x, w1, preferred_element_type=jnp.float32), 0.0)
    # Layer 2: width-1 output -> VPU multiply + XLU lane reduce (keeps MXU free).
    q = jnp.sum(y * w2_ref[...], axis=-1, keepdims=True)          # (TB, 1)
    q_ref[...] = q + b2_ref[0, 0]


def _round_up(n, m):
    return ((n + m - 1) // m) * m


def critic_forward(states, actions, w1_s, w1_a, b1, w2, b2, *, block_b=256):
    B = states.shape[0]
    H = w1_s.shape[1]
    Hp = _round_up(H, 128)                       # lane-dense hidden width (300 -> 384)

    # ---- wrapper-side packing (pure layout plumbing, done once per call) ----
    ones = jnp.ones((B, 1), dtype=jnp.float32)
    x = jnp.concatenate([states, actions, ones], axis=1)             # (B, Din)
    w1 = jnp.concatenate([w1_s, w1_a, b1], axis=0)                   # (Din, H)
    w1 = jnp.pad(w1, ((0, 0), (0, Hp - H)))                          # (Din, Hp)
    w2_row = jnp.pad(jnp.reshape(w2, (1, H)), ((0, 0), (0, Hp - H))) # (1, Hp)
    din = x.shape[1]

    # ---- batch tiling: sublane-aligned tile, pad B to a multiple of it ----
    tb = min(block_b, _round_up(B, 8))
    bp = _round_up(B, tb)
    if bp != B:
        x = jnp.pad(x, ((0, bp - B), (0, 0)))
    grid = (bp // tb,)

    q = pl.pallas_call(
        critic_kernel,
        out_shape=jax.ShapeDtypeStruct((bp, 1), jnp.float32),
        grid=grid,
        in_specs=[
            # Activations: streamed / double-buffered over the batch grid.
            pl.BlockSpec((tb, din), lambda i: (i, 0)),
            # Weights: constant index_map -> stay resident in VMEM (no re-fetch).
            pl.BlockSpec((din, Hp), lambda i: (0, 0)),
            pl.BlockSpec((1, Hp), lambda i: (0, 0)),
            # b2: single scalar in SMEM (avoids a padded 4 KiB VMEM tile + DMA).
            pl.BlockSpec(memory_space=pltpu.MemorySpace.SMEM),
        ],
        # (tb, 1) output. For very large B a lane-dense (1, tb) output layout
        # (un-transposed in the wrapper) would further cut masked-store cost.
        out_specs=pl.BlockSpec((tb, 1), lambda i: (i, 0)),
        compiler_params=pltpu.CompilerParams(
            dimension_semantics=("parallel",)),   # shards batch over v7x's 2 TCs
    )(x, w1, w2_row, b2)
    return q[:B]


if __name__ == "__main__":
    # Small, deterministic example shapes consistent with the module.
    B, STATE_DIM, ACTION_DIM, HIDDEN = 8, 16, 8, 300

    key = jax.random.PRNGKey(0)
    k_s, k_a, k_w1s, k_w1a, k_w2 = jax.random.split(key, 5)

    states = jax.random.normal(k_s, (B, STATE_DIM), dtype=jnp.float32)
    actions = jax.random.normal(k_a, (B, ACTION_DIM), dtype=jnp.float32)
    # "randn * 0.001" parameter init, biases zero (matches __init__ intent).
    w1_s = jax.random.normal(k_w1s, (STATE_DIM, HIDDEN), dtype=jnp.float32) * 1e-3
    w1_a = jax.random.normal(k_w1a, (ACTION_DIM, HIDDEN), dtype=jnp.float32) * 1e-3
    b1 = jnp.zeros((1, HIDDEN), dtype=jnp.float32)
    # nn.Linear(300, 1): weight normal(0, 0.001), bias zero. Stored transposed (H, 1).
    w2 = jax.random.normal(k_w2, (HIDDEN, 1), dtype=jnp.float32) * 1e-3
    b2 = jnp.zeros((1, 1), dtype=jnp.float32)

    q = critic_forward(states, actions, w1_s, w1_a, b1, w2, b2)
    q = jax.block_until_ready(q)

    # Pure-JAX f32 reference check (kernel dots run in bf16 -> relaxed tolerance).
    y_ref = jnp.maximum(states @ w1_s + actions @ w1_a + b1, 0.0)
    q_ref = y_ref @ w2 + b2
    assert q.shape == (B, 1)
    assert jnp.allclose(q, q_ref, atol=1e-5, rtol=2e-2), (q, q_ref)

    print("KERNEL_OK")
</pallas_src>

<mosaic_0001>
module attributes {stable_mosaic.version = 11 : i64} {
  func.func @critic_kernel(%arg0: i32, %arg1: memref<8x25xf32, #tpu.memory_space<vmem>>, %arg2: memref<25x384xf32, #tpu.memory_space<vmem>>, %arg3: memref<1x384xf32, #tpu.memory_space<vmem>>, %arg4: memref<1x1xf32, #tpu.memory_space<smem>>, %arg5: memref<8x1xf32, #tpu.memory_space<vmem>>) attributes {dimension_semantics = [#tpu.dimension_semantics<parallel>], iteration_bounds = array<i64: 1>, scalar_prefetch = 0 : i64, scratch_operands = 0 : i64, tpu.core_type = #tpu.core_type<tc>, window_params = [{transform_indices = @transform_0, window_bounds = array<i64: 8, 25>}, {pipeline_mode = #tpu.pipeline_mode<synchronous>, transform_indices = @transform_1, window_bounds = array<i64: 25, 384>}, {pipeline_mode = #tpu.pipeline_mode<synchronous>, transform_indices = @transform_2, window_bounds = array<i64: 1, 384>}, {transform_indices = @transform_3, window_bounds = array<i64: 1, 1>}, {transform_indices = @transform_4, window_bounds = array<i64: 8, 1>}]} {
    %c0 = arith.constant 0 : index
    %c0_0 = arith.constant 0 : index
    %0 = vector.load %arg1[%c0, %c0_0] : memref<8x25xf32, #tpu.memory_space<vmem>>, vector<8x25xf32>
    %1 = arith.truncf %0 : vector<8x25xf32> to vector<8x25xbf16>
    %c0_1 = arith.constant 0 : index
    %c0_2 = arith.constant 0 : index
    %2 = vector.load %arg2[%c0_1, %c0_2] : memref<25x384xf32, #tpu.memory_space<vmem>>, vector<25x384xf32>
    %3 = arith.truncf %2 : vector<25x384xf32> to vector<25x384xbf16>
    %cst = arith.constant dense<0.000000e+00> : vector<8x384xf32>
    %4 = tpu.matmul %1, %3, %cst {dimension_numbers = #tpu.dot_dimension_numbers<[1], [0], [0], [1], [0, 0, 1, 1], [], []>} : vector<8x25xbf16>, vector<25x384xbf16>, vector<8x384xf32> -> vector<8x384xf32>
    %cst_3 = arith.constant 0.000000e+00 : f32
    %5 = vector.broadcast %cst_3 : f32 to vector<8x384xf32>
    %6 = arith.maximumf %4, %5 : vector<8x384xf32>
    %c0_4 = arith.constant 0 : index
    %c0_5 = arith.constant 0 : index
    %7 = vector.load %arg3[%c0_4, %c0_5] : memref<1x384xf32, #tpu.memory_space<vmem>>, vector<1x384xf32>
    %8 = vector.broadcast %7 : vector<1x384xf32> to vector<8x384xf32>
    %9 = arith.mulf %6, %8 : vector<8x384xf32>
    %cst_6 = arith.constant dense<0.000000e+00> : vector<8xf32>
    %10 = vector.multi_reduction <add>, %9, %cst_6 [1] : vector<8x384xf32> to vector<8xf32>
    %11 = vector.shape_cast %10 : vector<8xf32> to vector<8x1xf32>
    %c0_7 = arith.constant 0 : index
    %c0_8 = arith.constant 0 : index
    %12 = memref.load %arg4[%c0_7, %c0_8] : memref<1x1xf32, #tpu.memory_space<smem>>
    %13 = vector.broadcast %12 : f32 to vector<8x1xf32>
    %14 = arith.addf %11, %13 : vector<8x1xf32>
    %c0_9 = arith.constant 0 : index
    %c0_10 = arith.constant 0 : index
    %15 = vector.load %arg5[%c0_9, %c0_10] : memref<8x1xf32, #tpu.memory_space<vmem>>, vector<8x1xf32>
    tpu.vector_store %arg5[%c0_9, %c0_10], %14 {strides = array<i32>} : memref<8x1xf32, #tpu.memory_space<vmem>>, vector<8x1xf32>,
    return
  }
  func.func @transform_0(%arg0: i32) -> (i32, i32) {
    %c0_i32 = arith.constant 0 : i32
    %c0_i32_0 = arith.constant 0 : i32
    return %arg0, %c0_i32 : i32, i32
  }
  func.func @transform_1(%arg0: i32) -> (i32, i32) {
    %c0_i32 = arith.constant 0 : i32
    %c0_i32_0 = arith.constant 0 : i32
    %c0_i32_1 = arith.constant 0 : i32
    return %c0_i32, %c0_i32_0 : i32, i32
  }
  func.func @transform_2(%arg0: i32) -> (i32, i32) {
    %c0_i32 = arith.constant 0 : i32
    %c0_i32_0 = arith.constant 0 : i32
    %c0_i32_1 = arith.constant 0 : i32
    return %c0_i32, %c0_i32_0 : i32, i32
  }
  func.func @transform_3(%arg0: i32) -> (i32, i32) {
    %c0_i32 = arith.constant 0 : i32
    %c0_i32_0 = arith.constant 0 : i32
    %c0_i32_1 = arith.constant 0 : i32
    return %c0_i32, %c0_i32_0 : i32, i32
  }
  func.func @transform_4(%arg0: i32) -> (i32, i32) {
    %c0_i32 = arith.constant 0 : i32
    %c0_i32_0 = arith.constant 0 : i32
    return %arg0, %c0_i32 : i32, i32
  }
}

</mosaic_0001>

<llo_original>
// kernel: tpu_custom_call.1
$region0: #{tpu_custom_call.1}
  #allocation0 [shape = 'u32[]', space=smem, size = 0x4, offset = 0x4, fixed_abs, tag = 'smem constant byte address 0x4 - core index']
  #allocation1 [shape = 'u32[144,128]{1,0:T(1,128)}', space=vmem, size = 0x12000, scoped, tag = 'internal scratch']
  #allocation2 [shape = 'f32[1,1]{1,0:T(1,128)S(6)}', space=smem, size = 0x200, scoped, tag = 'scoped memory for tpu_custom_call.1']
  %s0 = inlined_call_operand.hbm [shape: f32[8,25], index: 0, kind: input, shape index: {}]
  %s1 = inlined_call_operand.hbm [shape: f32[25,384], index: 1, kind: input, shape index: {}]
  %s2 = inlined_call_operand.vmem [shape: f32[1,384], index: 2, kind: input, shape index: {}]
  %s3 = inlined_call_operand.<no memory space> [shape: f32[1,1], index: 3, kind: input, shape index: {}]
  %s4 = inlined_call_operand.vmem [shape: f32[8,1], index: 4, kind: output, shape index: {}]
  %s5 = sld [smem:[#allocation0]]
  $region34: #{tpu_custom_call.1} parent=0
    _
  %s7 = ssub.s32 1, %s5
  %s8 = scalar_select 0, %s7, %s5
  %9 = sst [smem:[#allocation2]] %s3
  $region1: #{tpu_custom_call.1} parent=0
    #allocation3 [shape = 'u8[4096]{0}', space=vmem, size = 0x1000, scoped, tag = 'input window, operand 0, single buffered']
    #allocation4 [shape = 's32[1]{0}', space=sflag, size = 0x4, scoped, tag = 'scoped memory for tpu_custom_call.1']
    #allocation5 [shape = 'u8[49152]{0}', space=vmem, size = 0xc000, scoped, tag = 'input window, operand 1, single buffered']
    #allocation6 [shape = 's32[1]{0}', space=sflag, size = 0x4, scoped, tag = 'scoped memory for tpu_custom_call.1']
    %10 = vsyncpa [#allocation4], 0
    %11 = vsyncpa [#allocation6], 0
    // Predicated region
    $region2: #{tpu_custom_call.1} parent=1 // pred_check
      _
    $region3: #{tpu_custom_call.1} parent=1 // pred_check_branch
      %13 = sbr.rel (0) target = $region5
    $region4: #{tpu_custom_call.1} parent=1 // pred_region
      %s15 = ssub.s32 128, 128
      %16 = vsyncadd [#allocation4], %s15
      %s18 = sshll.u32 [#allocation3], 4
      %s19 = int_to_ptr.vmem [resolvable:$true] %s18
      %21 = dma.hbm_to_vmem [thread:$0]  %s0, 128, %s19, [#allocation4]
    $region5: #{tpu_custom_call.1} parent=1 // pred_fallthru
      _
    // Predicated region
    $region6: #{tpu_custom_call.1} parent=1 // pred_check
      _
    $region7: #{tpu_custom_call.1} parent=1 // pred_check_branch
      %23 = sbr.rel (0) target = $region9
    $region8: #{tpu_custom_call.1} parent=1 // pred_region
      %s25 = ssub.s32 1536, 1536
      %26 = vsyncadd [#allocation6], %s25
      %s27 = sshll.u32 [#allocation5], 4
      %s28 = int_to_ptr.vmem [resolvable:$true] %s27
      %33 = dma.hbm_to_vmem [thread:$0]  %s1, 1536, %s28, [#allocation6], 384, 384, 24
    $region9: #{tpu_custom_call.1} parent=1 // pred_fallthru
      _
    // Predicated region
    $region10: #{tpu_custom_call.1} parent=1 // pred_check
      _
    $region11: #{tpu_custom_call.1} parent=1 // pred_check_branch
      %35 = sbr.rel (0) target = $region13
    $region12: #{tpu_custom_call.1} parent=1 // pred_region
      _
    $region13: #{tpu_custom_call.1} parent=1 // pred_fallthru
      _
    // Predicated region
    $region14: #{tpu_custom_call.1} parent=1 // pred_check
      _
    $region15: #{tpu_custom_call.1} parent=1 // pred_check_branch
      %37 = sbr.rel (0) target = $region17
    $region16: #{tpu_custom_call.1} parent=1 // pred_region
      _
    $region17: #{tpu_custom_call.1} parent=1 // pred_fallthru
      _
    // Predicated region
    $region18: #{tpu_custom_call.1} parent=1 // pred_check
      _
    $region19: #{tpu_custom_call.1} parent=1 // pred_check_branch
      %39 = sbr.rel (0) target = $region21
    $region20: #{tpu_custom_call.1} parent=1 // pred_region
      %40 = dma.done [#allocation4], 128
    $region21: #{tpu_custom_call.1} parent=1 // pred_fallthru
      _
    // Predicated region
    $region22: #{tpu_custom_call.1} parent=1 // pred_check
      _
    $region23: #{tpu_custom_call.1} parent=1 // pred_check_branch
      %42 = sbr.rel (0) target = $region25
    $region24: #{tpu_custom_call.1} parent=1 // pred_region
      %43 = dma.done [#allocation6], 1536
    $region25: #{tpu_custom_call.1} parent=1 // pred_fallthru
      _
    %v45 = vld [vmem:[#allocation3] sm:$0xff]
    %v46 = vpack.c.bf16 %v45, %v45
    %v47 = vld [vmem:[#allocation5] sm:$0xff]
    %v48 = vld [vmem:[#allocation5 + $0x8] sm:$0xff]
    %v49 = vld [vmem:[#allocation5 + $0x10] sm:$0xff]
    %v50 = vld [vmem:[#allocation5 + $0x18] sm:$0xff]
    %v51 = vld [vmem:[#allocation5 + $0x20] sm:$0xff]
    %v52 = vld [vmem:[#allocation5 + $0x28] sm:$0xff]
    %v53 = vld [vmem:[#allocation5 + $0x30] sm:$0xff]
    %v54 = vld [vmem:[#allocation5 + $0x38] sm:$0xff]
    %v55 = vld [vmem:[#allocation5 + $0x40] sm:$0xff]
    %v56 = vld [vmem:[#allocation5 + $0x48] sm:$0x1]
    %v57 = vld [vmem:[#allocation5 + $0x50] sm:$0x1]
    %v58 = vld [vmem:[#allocation5 + $0x58] sm:$0x1]
    %v59 = vpack.c.bf16 %v50, %v47
    %v60 = vpack.c.bf16 %v51, %v48
    %v61 = vpack.c.bf16 %v52, %v49
    %v62 = vpack.c.bf16 %v56, %v53
    %v63 = vpack.c.bf16 %v57, %v54
    %v64 = vpack.c.bf16 %v58, %v55
    %vm65 = vcmask 203776
    %v67 = vsel %vm65, %v46, 0
    %vm69 = vcmask 1043456
    %vm70 = vcmask 1044480
    %v71 = vsel %vm69, 4294967295, 65535
    %v72 = vsel %vm70, %v71, 0
    %v74 = vand.u32 %v62, %v72
    %v77 = vand.u32 %v63, %v72
    %v80 = vand.u32 %v64, %v72
    %82 = vmatprep.subr.bf16.mxu0 %v60
    %83 = vmatpush1.bf16.msra.mxu0 %v59
    %84 = vmatprep.subr.bf16.mxu0 %v77
    %85 = vmatpush1.bf16.msra.mxu0 %v74
    %86 = vmatprep.subr.bf16.mxu0 0
    %87 = vmatpush1.bf16.msra.mxu0 0
    %88 = vmatprep.subr.bf16.mxu0 0
    %89 = vmatpush1.bf16.msra.mxu0 0
    %90 = vmatprep.subr.bf16.mxu0 0
    %91 = vmatpush1.bf16.msra.mxu0 0
    %92 = vmatprep.subr.bf16.mxu0 0
    %93 = vmatpush1.bf16.msra.mxu0 0
    %94 = vmatprep.subr.bf16.mxu0 0
    %95 = vmatpush1.bf16.msra.mxu0 0
    %96 = vmatprep.subr.bf16.mxu0 0
    %97 = vmatpush1.bf16.msra.mxu0 0
    %98 = vmatprep.subr.bf16.mxu0 0
    %99 = vmatpush1.bf16.msra.mxu0 0
    %100 = vmatprep.subr.bf16.mxu0 0
    %101 = vmatpush1.bf16.msra.mxu0 0
    %102 = vmatprep.subr.bf16.mxu0 0
    %103 = vmatpush1.bf16.msra.mxu0 0
    %104 = vmatprep.subr.bf16.mxu0 0
    %105 = vmatpush1.bf16.msra.mxu0 0
    %106 = vmatprep.subr.bf16.mxu0 0
    %107 = vmatpush1.bf16.msra.mxu0 0
    %108 = vmatprep.subr.bf16.mxu0 0
    %109 = vmatpush1.bf16.msra.mxu0 0
    %110 = vmatprep.subr.bf16.mxu0 0
    %111 = vmatpush1.bf16.msra.mxu0 0
    %112 = vmatprep.subr.bf16.mxu0 0
    %113 = vmatpush1.bf16.msra.mxu0 0
    %114 = vmatprep.mubr.bf16.mxu0 0
    %115 = vmatmul.mubr.bf16.gmra.mrb[0].mxu0 %v67
    %v116 = vpop.f32.mrb[0].mxu0
    %v117 = vadd.f32 0.0, %v116
    %v118 = vpop.f32.mrb[0].mxu0
    %v119 = vadd.f32 0.0, %v118
    %v120 = vpop.f32.mrb[0].mxu0
    %v121 = vpop.f32.mrb[0].mxu0
    %122 = vdwg.mxu0
    %123 = vmatprep.subr.bf16.mxu0 0
    %124 = vmatpush1.bf16.msra.mxu0 %v61
    %125 = vmatprep.subr.bf16.mxu0 0
    %126 = vmatpush1.bf16.msra.mxu0 %v80
    %127 = vmatprep.subr.bf16.mxu0 0
    %128 = vmatpush1.bf16.msra.mxu0 0
    %129 = vmatprep.subr.bf16.mxu0 0
    %130 = vmatpush1.bf16.msra.mxu0 0
    %131 = vmatprep.subr.bf16.mxu0 0
    %132 = vmatpush1.bf16.msra.mxu0 0
    %133 = vmatprep.subr.bf16.mxu0 0
    %134 = vmatpush1.bf16.msra.mxu0 0
    %135 = vmatprep.subr.bf16.mxu0 0
    %136 = vmatpush1.bf16.msra.mxu0 0
    %137 = vmatprep.subr.bf16.mxu0 0
    %138 = vmatpush1.bf16.msra.mxu0 0
    %139 = vmatprep.subr.bf16.mxu0 0
    %140 = vmatpush1.bf16.msra.mxu0 0
    %141 = vmatprep.subr.bf16.mxu0 0
    %142 = vmatpush1.bf16.msra.mxu0 0
    %143 = vmatprep.subr.bf16.mxu0 0
    %144 = vmatpush1.bf16.msra.mxu0 0
    %145 = vmatprep.subr.bf16.mxu0 0
    %146 = vmatpush1.bf16.msra.mxu0 0
    %147 = vmatprep.subr.bf16.mxu0 0
    %148 = vmatpush1.bf16.msra.mxu0 0
    %149 = vmatprep.subr.bf16.mxu0 0
    %150 = vmatpush1.bf16.msra.mxu0 0
    %151 = vmatprep.subr.bf16.mxu0 0
    %152 = vmatpush1.bf16.msra.mxu0 0
    %153 = vmatprep.subr.bf16.mxu0 0
    %154 = vmatpush1.bf16.msra.mxu0 0
    %155 = vmatprep.mubr.bf16.mxu0 0
    %156 = vmatmul.mubr.bf16.gmra.mrb[0].mxu0 %v67
    %v157 = vpop.f32.mrb[0].mxu0
    %v158 = vadd.f32 0.0, %v157
    %v159 = vpop.f32.mrb[0].mxu0
    %v160 = vpop.f32.mrb[0].mxu0
    %v161 = vpop.f32.mrb[0].mxu0
    %162 = vdwg.mxu0
    %v163 = vmax.f32 %v117, 0.0
    %v164 = vmax.f32 %v119, 0.0
    %v165 = vmax.f32 %v158, 0.0
    %v166 = vld [vmem:[%s2] sm:$0x7]
    %v168 = vlaneseq
    %v169 = vshrl.u32 %v168, 7
    %v170 = vsub.s32 0, %v169
    %v171 = vrot.slane %v166, %v170
    %v172 = vlaneseq
    %v173 = vshrl.u32 %v172, 7
    %v174 = vsub.s32 1, %v173
    %v175 = vrot.slane %v166, %v174
    %v176 = vlaneseq
    %v177 = vshrl.u32 %v176, 7
    %v178 = vsub.s32 2, %v177
    %v179 = vrot.slane %v166, %v178
    %v183 = vmul.f32 %v163, %v171
    %v184 = vmul.f32 %v164, %v175
    %v185 = vmul.f32 %v165, %v179
    %v186 = vadd.f32 %v183, %v184
    %v187 = vadd.f32 %v186, %v185
    %188 = vadd.xlane.f32.xlu0 %v187
    %v189 = vpop.xlane.xlu0 %188
    %s190 = sld [smem:[#allocation2]]
    %v191 = vstv %s190
    %v192 = vadd.f32 %v189, %v191
    %vm193 = vcmask 7168
    %194 = vst.msk [vmem:[%s4] sm:$0xff] %vm193, %v192
    // Predicated region
    $region26: #{tpu_custom_call.1} parent=1 // pred_check
      _
    $region27: #{tpu_custom_call.1} parent=1 // pred_check_branch
      %196 = sbr.rel (0) target = $region29
    $region28: #{tpu_custom_call.1} parent=1 // pred_region
      _
    $region29: #{tpu_custom_call.1} parent=1 // pred_fallthru
      _
    // Predicated region
    $region30: #{tpu_custom_call.1} parent=1 // pred_check
      _
    $region31: #{tpu_custom_call.1} parent=1 // pred_check_branch
      %198 = sbr.rel (0) target = $region33
    $region32: #{tpu_custom_call.1} parent=1 // pred_region
      _
    $region33: #{tpu_custom_call.1} parent=1 // pred_fallthru
      _
    %199 = vsyncpa [#allocation4], 1
    %200 = vsyncpa [#allocation6], 1

</llo_original>
